<compile_context>
chip_gen: v6e
topology: v6e:2x2x1
jax: 0.10.0
libtpu: 0.0.40
codegen_flags: <defaults>
</compile_context>

<pallas_src>
import functools

import jax
import jax.numpy as jnp
from jax.experimental import pallas as pl
from jax.experimental.pallas import tpu as pltpu


def _round_up(x, m):
    return (x + m - 1) // m * m


# ----------------------------------------------------------------------------
# Fused kernel: distance -> Student-t kernel -> row normalization.
# ----------------------------------------------------------------------------
def _clustering_kernel(x_ref, ct_ref, q_ref, *, alpha, distance, eps):
    x_in = x_ref[...]                                # [tb, zdim]  (native dtype)
    ct_in = ct_ref[...]                              # [zdim, nC]  (native dtype)

    # Cross term on the MXU: x @ C^T -> [tb, nC], f32 accumulation.
    xc = jax.lax.dot_general(x_in, ct_in, (((1,), (0,)), ((), ())),
                             preferred_element_type=jnp.float32)

    # VPU terms in f32 (v5e VPU/EUP have no bf16).
    x = x_in.astype(jnp.float32)
    ct = ct_in.astype(jnp.float32)
    xsq = jnp.sum(x * x, axis=-1, keepdims=True)     # [tb, 1]
    csq = jnp.sum(ct * ct, axis=0, keepdims=True)    # [1, nC] (resident block, cheap)

    if distance == 'l2':
        # ||x - c||^2 = ||x||^2 + ||c||^2 - 2 x.c  (clamped against fp round-off)
        d = jnp.maximum(xsq + csq - 2.0 * xc, 0.0)
    else:  # 'cosine':  d = -cos_sim(x, c)
        denom = jnp.maximum(jnp.sqrt(xsq) * jnp.sqrt(csq), eps)
        d = -(xc / denom)

    q = 1.0 / (1.0 + d / alpha)
    p = (alpha + 1.0) / 2.0                          # static Python float
    if p == 1.0:
        pass
    elif p == 1.5:
        q = q * jnp.sqrt(q)
    elif p == 2.0:
        q = q * q
    elif p == 0.5:
        q = jnp.sqrt(q)
    else:
        q = jnp.exp(p * jnp.log(q))
    q = q * pl.reciprocal(jnp.sum(q, axis=-1, keepdims=True), approx=False)
    q_ref[...] = q.astype(q_ref.dtype)


# ----------------------------------------------------------------------------
# Wrapper.
# ----------------------------------------------------------------------------
@functools.partial(jax.jit, static_argnames=('alpha', 'distance', 'block_rows'))
def clustering_forward(x, clusters, alpha=1.0, distance='l2', block_rows=None):
    """x: [B, zdim], clusters: [nClusters, zdim] -> q: [B, nClusters] (f32)."""
    B, zdim = x.shape
    nC, zdim2 = clusters.shape
    assert zdim == zdim2
    assert distance in ('l2', 'cosine')

    x_itemsize = jnp.dtype(x.dtype).itemsize
    c_itemsize = jnp.dtype(clusters.dtype).itemsize

    if block_rows is None:
        # Fill ~4 MiB per double-buffered x slot (v7x's 64 MiB VMEM stays safe),
        # never below 256 rows so per-grid-step overhead (~0.35 us) is amortized.
        block_rows = max(256, min(2048, (4 << 20) // max(1, zdim * x_itemsize)))
        # Keep >=2 grid steps when B is large enough so both v7x TensorCores
        # get work under dimension_semantics=("parallel",).
        if B > 128:
            block_rows = min(block_rows, _round_up(pl.cdiv(B, 2), 8))
    tb = min(_round_up(block_rows, 8), _round_up(B, 8))    # multiple of 8 sublanes
    grid = (pl.cdiv(B, tb),)                               # ragged last block OK

    # Contraction-major RHS for the MXU (tiny, parameter-derived transpose).
    clusters_t = clusters.T                                # [zdim, nC]

    kernel = functools.partial(_clustering_kernel, alpha=float(alpha),
                               distance=distance, eps=1e-8)

    cost = pl.CostEstimate(
        flops=2 * B * nC * zdim + 10 * B * nC,
        transcendentals=(2 * B * nC) if float(alpha) != 1.0 else 0,
        bytes_accessed=x_itemsize * B * zdim + c_itemsize * nC * zdim + 4 * B * nC,
    )

    # Explicit VMEM budget: x + q double buffers + resident clusters, with margin.
    vmem_bytes = (2 * tb * zdim * x_itemsize
                  + 2 * tb * nC * 4
                  + 2 * zdim * nC * c_itemsize)
    vmem_limit = int(min(100 << 20, max(32 << 20, 2 * vmem_bytes)))

    q = pl.pallas_call(
        kernel,
        out_shape=jax.ShapeDtypeStruct((B, nC), jnp.float32),
        grid_spec=pltpu.PrefetchScalarGridSpec(
            num_scalar_prefetch=0,
            grid=grid,
            in_specs=[
                pl.BlockSpec((tb, zdim), lambda i: (i, 0)),   # x rows (tiled)
                pl.BlockSpec((zdim, nC), lambda i: (0, 0)),   # clusters^T (resident)
            ],
            out_specs=pl.BlockSpec((tb, nC), lambda i: (i, 0)),
        ),
        compiler_params=pltpu.CompilerParams(
            dimension_semantics=("parallel",),
            vmem_limit_bytes=vmem_limit),
        cost_estimate=cost,
    )(x, clusters_t)
    return q


# ----------------------------------------------------------------------------
# Pure-JAX reference mirroring the PyTorch forward (for verification).
# ----------------------------------------------------------------------------
def clustering_reference(x, clusters, alpha=1.0, distance='l2', eps=1e-8):
    x = x.astype(jnp.float32)
    clusters = clusters.astype(jnp.float32)
    x1 = x[:, None, :]
    x2 = clusters[None, :, :]
    if distance == 'l2':
        d = jnp.sum(jnp.square(x1 - x2), axis=2)
    else:
        num = jnp.sum(x1 * x2, axis=2)
        den = jnp.maximum(
            jnp.sqrt(jnp.sum(x1 * x1, axis=2)) * jnp.sqrt(jnp.sum(x2 * x2, axis=2)),
            eps)
        d = -(num / den)
    q = (1.0 + d / alpha) ** (-1.0)
    q = q ** ((alpha + 1.0) / 2.0)
    q = q / jnp.sum(q, axis=1, keepdims=True)
    return q


if __name__ == "__main__":
    key = jax.random.PRNGKey(0)
    k1, k2, k3, k4 = jax.random.split(key, 4)

    # Case 1: default config (l2, alpha=1), single row tile.
    B, nC, zdim = 8, 10, 32
    x = jax.random.normal(k1, (B, zdim), jnp.float32)
    centroids = jax.random.normal(k2, (nC, zdim), jnp.float32)
    q = clustering_forward(x, centroids, alpha=1.0, distance='l2')
    jax.block_until_ready(q)
    q_ref = clustering_reference(x, centroids, 1.0, 'l2')
    assert q.shape == (B, nC), q.shape
    assert bool(jnp.allclose(jnp.sum(q, axis=1), 1.0, atol=1e-5))
    assert bool(jnp.allclose(q, q_ref, rtol=1e-3, atol=1e-5)), \
        float(jnp.max(jnp.abs(q - q_ref)))

    # Case 2: batch spanning several row tiles with a ragged final block
    # (exercises the no-pad / masked-block path and the multi-step grid).
    B2, nC2, zdim2 = 300, 16, 128
    x2 = jax.random.normal(k3, (B2, zdim2), jnp.float32)
    c2 = jax.random.normal(k4, (nC2, zdim2), jnp.float32)
    q2 = clustering_forward(x2, c2, alpha=1.0, distance='l2', block_rows=128)
    jax.block_until_ready(q2)
    q2_ref = clustering_reference(x2, c2, 1.0, 'l2')
    assert q2.shape == (B2, nC2), q2.shape
    assert bool(jnp.allclose(q2, q2_ref, rtol=1e-3, atol=1e-5)), \
        float(jnp.max(jnp.abs(q2 - q2_ref)))

    # Case 3: cosine distance, alpha != 1 (exercises the p=1.5 fast-power path).
    q3 = clustering_forward(x, centroids, alpha=2.0, distance='cosine')
    jax.block_until_ready(q3)
    q3_ref = clustering_reference(x, centroids, 2.0, 'cosine')
    assert bool(jnp.allclose(q3, q3_ref, rtol=1e-3, atol=1e-5)), \
        float(jnp.max(jnp.abs(q3 - q3_ref)))

    # Case 4: bf16 inputs feed the MXU natively (looser tolerance).
    xb = x.astype(jnp.bfloat16)
    cb = centroids.astype(jnp.bfloat16)
    q4 = clustering_forward(xb, cb, alpha=1.0, distance='l2')
    jax.block_until_ready(q4)
    q4_ref = clustering_reference(xb, cb, 1.0, 'l2')
    assert bool(jnp.allclose(q4, q4_ref, rtol=3e-2, atol=3e-3)), \
        float(jnp.max(jnp.abs(q4 - q4_ref)))

    assert bool(jnp.all(jnp.isfinite(q)))
    assert bool(jnp.all(jnp.isfinite(q2)))
    assert bool(jnp.all(jnp.isfinite(q3)))
    assert bool(jnp.all(jnp.isfinite(q4)))
    print("KERNEL_OK")
</pallas_src>

<mosaic_0001>
module attributes {stable_mosaic.version = 11 : i64} {
  func.func @_clustering_kernel(%arg0: i32, %arg1: memref<8x32xf32, #tpu.memory_space<vmem>>, %arg2: memref<32x10xf32, #tpu.memory_space<vmem>>, %arg3: memref<8x10xf32, #tpu.memory_space<vmem>>) attributes {dimension_semantics = [#tpu.dimension_semantics<parallel>], iteration_bounds = array<i64: 1>, scalar_prefetch = 0 : i64, scratch_operands = 0 : i64, tpu.core_type = #tpu.core_type<tc>, window_params = [{transform_indices = @transform_0, window_bounds = array<i64: 8, 32>}, {pipeline_mode = #tpu.pipeline_mode<synchronous>, transform_indices = @transform_1, window_bounds = array<i64: 32, 10>}, {transform_indices = @transform_2, window_bounds = array<i64: 8, 10>}]} {
    %c0 = arith.constant 0 : index
    %c0_0 = arith.constant 0 : index
    %0 = vector.load %arg1[%c0, %c0_0] : memref<8x32xf32, #tpu.memory_space<vmem>>, vector<8x32xf32>
    %c0_1 = arith.constant 0 : index
    %c0_2 = arith.constant 0 : index
    %1 = vector.load %arg2[%c0_1, %c0_2] : memref<32x10xf32, #tpu.memory_space<vmem>>, vector<32x10xf32>
    %cst = arith.constant dense<0.000000e+00> : vector<8x10xf32>
    %2 = tpu.matmul %0, %1, %cst {dimension_numbers = #tpu.dot_dimension_numbers<[1], [0], [0], [1], [0, 0, 1, 1], [], []>} : vector<8x32xf32>, vector<32x10xf32>, vector<8x10xf32> -> vector<8x10xf32>
    %3 = arith.mulf %0, %0 : vector<8x32xf32>
    %cst_3 = arith.constant dense<0.000000e+00> : vector<8xf32>
    %4 = vector.multi_reduction <add>, %3, %cst_3 [1] : vector<8x32xf32> to vector<8xf32>
    %5 = vector.shape_cast %4 : vector<8xf32> to vector<8x1xf32>
    %6 = arith.mulf %1, %1 : vector<32x10xf32>
    %cst_4 = arith.constant dense<0.000000e+00> : vector<10xf32>
    %7 = vector.multi_reduction <add>, %6, %cst_4 [0] : vector<32x10xf32> to vector<10xf32>
    %8 = vector.shape_cast %7 : vector<10xf32> to vector<1x10xf32>
    %9 = vector.broadcast %5 : vector<8x1xf32> to vector<8x10xf32>
    %10 = vector.broadcast %8 : vector<1x10xf32> to vector<8x10xf32>
    %11 = arith.addf %9, %10 : vector<8x10xf32>
    %cst_5 = arith.constant 2.000000e+00 : f32
    %12 = vector.broadcast %cst_5 : f32 to vector<8x10xf32>
    %13 = arith.mulf %12, %2 : vector<8x10xf32>
    %14 = arith.subf %11, %13 : vector<8x10xf32>
    %cst_6 = arith.constant 0.000000e+00 : f32
    %15 = vector.broadcast %cst_6 : f32 to vector<8x10xf32>
    %16 = arith.maximumf %14, %15 : vector<8x10xf32>
    %cst_7 = arith.constant 1.000000e+00 : f32
    %17 = vector.broadcast %cst_7 : f32 to vector<8x10xf32>
    %18 = arith.divf %16, %17 : vector<8x10xf32>
    %cst_8 = arith.constant 1.000000e+00 : f32
    %19 = vector.broadcast %cst_8 : f32 to vector<8x10xf32>
    %20 = arith.addf %19, %18 : vector<8x10xf32>
    %cst_9 = arith.constant 1.000000e+00 : f32
    %21 = vector.broadcast %cst_9 : f32 to vector<8x10xf32>
    %22 = arith.divf %21, %20 : vector<8x10xf32>
    %cst_10 = arith.constant dense<0.000000e+00> : vector<8xf32>
    %23 = vector.multi_reduction <add>, %22, %cst_10 [1] : vector<8x10xf32> to vector<8xf32>
    %24 = vector.shape_cast %23 : vector<8xf32> to vector<8x1xf32>
    %25 = tpu.reciprocal %24 : vector<8x1xf32> -> vector<8x1xf32>
    %26 = vector.broadcast %25 : vector<8x1xf32> to vector<8x10xf32>
    %27 = arith.mulf %22, %26 : vector<8x10xf32>
    %c0_11 = arith.constant 0 : index
    %c0_12 = arith.constant 0 : index
    %28 = vector.load %arg3[%c0_11, %c0_12] : memref<8x10xf32, #tpu.memory_space<vmem>>, vector<8x10xf32>
    tpu.vector_store %arg3[%c0_11, %c0_12], %27 {strides = array<i32>} : memref<8x10xf32, #tpu.memory_space<vmem>>, vector<8x10xf32>,
    return
  }
  func.func @transform_0(%arg0: i32) -> (i32, i32) {
    %c0_i32 = arith.constant 0 : i32
    %c0_i32_0 = arith.constant 0 : i32
    return %arg0, %c0_i32 : i32, i32
  }
  func.func @transform_1(%arg0: i32) -> (i32, i32) {
    %c0_i32 = arith.constant 0 : i32
    %c0_i32_0 = arith.constant 0 : i32
    %c0_i32_1 = arith.constant 0 : i32
    return %c0_i32, %c0_i32_0 : i32, i32
  }
  func.func @transform_2(%arg0: i32) -> (i32, i32) {
    %c0_i32 = arith.constant 0 : i32
    %c0_i32_0 = arith.constant 0 : i32
    return %arg0, %c0_i32 : i32, i32
  }
}

</mosaic_0001>

<llo_original>
// kernel: clustering_forward.1
$region0: #{clustering_forward.1}
  #allocation0 [shape = 'u32[]', space=smem, size = 0x4, offset = 0x4, fixed_abs, tag = 'smem constant byte address 0x4 - core index']
  #allocation1 [shape = 'u32[144,128]{1,0:T(1,128)}', space=vmem, size = 0x12000, scoped, tag = 'internal scratch']
  %s0 = inlined_call_operand.vmem [shape: f32[8,32], index: 0, kind: input, shape index: {}]
  %s1 = inlined_call_operand.vmem [shape: f32[32,10], index: 1, kind: input, shape index: {}]
  %s2 = inlined_call_operand.hbm [shape: f32[8,10], index: 2, kind: output, shape index: {}]
  %s3 = sld [smem:[#allocation0]]
  $region18: #{clustering_forward.1} parent=0
    _
  %s5 = ssub.s32 1, %s3
  %s6 = scalar_select 0, %s5, %s3
  $region1: #{clustering_forward.1} parent=0
    #allocation2 [shape = 'u8[4096]{0}', space=vmem, size = 0x1000, scoped, tag = 'output window, operand 0, single buffered']
    #allocation3 [shape = 's32[1]{0}', space=sflag, size = 0x4, scoped, tag = 'scoped memory for clustering_forward.1']
    %7 = vsyncpa [#allocation3], 0
    // Predicated region
    $region2: #{clustering_forward.1} parent=1 // pred_check
      _
    $region3: #{clustering_forward.1} parent=1 // pred_check_branch
      %9 = sbr.rel (0) target = $region5
    $region4: #{clustering_forward.1} parent=1 // pred_region
      _
    $region5: #{clustering_forward.1} parent=1 // pred_fallthru
      _
    // Predicated region
    $region6: #{clustering_forward.1} parent=1 // pred_check
      _
    $region7: #{clustering_forward.1} parent=1 // pred_check_branch
      %11 = sbr.rel (0) target = $region9
    $region8: #{clustering_forward.1} parent=1 // pred_region
      _
    $region9: #{clustering_forward.1} parent=1 // pred_fallthru
      _
    %v12 = vld [vmem:[%s0] sm:$0xff]
    %v13 = vld [vmem:[%s1] sm:$0xff]
    %v14 = vld [vmem:[%s1 + $0x8] sm:$0xff]
    %v15 = vld [vmem:[%s1 + $0x10] sm:$0xff]
    %v16 = vld [vmem:[%s1 + $0x18] sm:$0xff]
    %vm17 = vcmask 261120
    %v19 = vsel %vm17, %v12, 0
    %21 = vmatprep.subr.mxu0 0.0
    %22 = vmatpush1.msra.mxu0 0.0
    %23 = vmatprep.subr.mxu0 0.0
    %24 = vmatpush1.msra.mxu0 0.0
    %25 = vmatprep.subr.mxu0 0.0
    %26 = vmatpush1.msra.mxu0 0.0
    %27 = vmatprep.subr.mxu0 0.0
    %28 = vmatpush1.msra.mxu0 0.0
    %29 = vmatprep.subr.mxu0 0.0
    %30 = vmatpush1.msra.mxu0 0.0
    %31 = vmatprep.subr.mxu0 0.0
    %32 = vmatpush1.msra.mxu0 0.0
    %33 = vmatprep.subr.mxu0 0.0
    %34 = vmatpush1.msra.mxu0 0.0
    %35 = vmatprep.subr.mxu0 0.0
    %36 = vmatpush1.msra.mxu0 0.0
    %37 = vmatprep.subr.mxu0 0.0
    %38 = vmatpush1.msra.mxu0 0.0
    %39 = vmatprep.subr.mxu0 0.0
    %40 = vmatpush1.msra.mxu0 0.0
    %41 = vmatprep.subr.mxu0 0.0
    %42 = vmatpush1.msra.mxu0 0.0
    %43 = vmatprep.subr.mxu0 0.0
    %44 = vmatpush1.msra.mxu0 0.0
    %45 = vmatprep.subr.mxu0 0.0
    %46 = vmatpush1.msra.mxu0 %v16
    %47 = vmatprep.subr.mxu0 0.0
    %48 = vmatpush1.msra.mxu0 %v15
    %49 = vmatprep.subr.mxu0 0.0
    %50 = vmatpush1.msra.mxu0 %v14
    %51 = vmatprep.subr.mxu0 0.0
    %52 = vmatpush1.msra.mxu0 %v13
    %53 = vmatprep.subr.mxu0 0.0
    %54 = vmatpush2.msra.mxu0 0.0
    %55 = vmatprep.subr.mxu0 0.0
    %56 = vmatpush2.msra.mxu0 0.0
    %57 = vmatprep.subr.mxu0 0.0
    %58 = vmatpush2.msra.mxu0 0.0
    %59 = vmatprep.subr.mxu0 0.0
    %60 = vmatpush2.msra.mxu0 0.0
    %61 = vmatprep.subr.mxu0 0.0
    %62 = vmatpush2.msra.mxu0 0.0
    %63 = vmatprep.subr.mxu0 0.0
    %64 = vmatpush2.msra.mxu0 0.0
    %65 = vmatprep.subr.mxu0 0.0
    %66 = vmatpush2.msra.mxu0 0.0
    %67 = vmatprep.subr.mxu0 0.0
    %68 = vmatpush2.msra.mxu0 0.0
    %69 = vmatprep.subr.mxu0 0.0
    %70 = vmatpush2.msra.mxu0 0.0
    %71 = vmatprep.subr.mxu0 0.0
    %72 = vmatpush2.msra.mxu0 0.0
    %73 = vmatprep.subr.mxu0 0.0
    %74 = vmatpush2.msra.mxu0 0.0
    %75 = vmatprep.subr.mxu0 0.0
    %76 = vmatpush2.msra.mxu0 0.0
    %77 = vmatprep.subr.mxu0 0.0
    %78 = vmatpush2.msra.mxu0 0.0
    %79 = vmatprep.subr.mxu0 0.0
    %80 = vmatpush2.msra.mxu0 0.0
    %81 = vmatprep.subr.mxu0 0.0
    %82 = vmatpush2.msra.mxu0 0.0
    %83 = vmatprep.subr.mxu0 0.0
    %84 = vmatpush2.msra.mxu0 0.0
    %85 = vmatprep.mubr.f32.mxu0 0.0
    %86 = vmatmul.mubr.f32.gmra.mxu0 %v19
    %v87 = vpop.f32.mrf.mxu0
    %v88 = vadd.f32 0.0, %v87
    %v89 = vpop.f32.mrf.mxu0
    %90 = vdwg.mxu0
    %v91 = vmul.f32 %v12, %v12
    %v92 = vsel %vm17, %v91, 0.0
    %93 = vadd.xlane.f32.xlu0 %v92
    %v94 = vpop.xlane.xlu0 %93
    %v95 = vmul.f32 %v13, %v13
    %v96 = vmul.f32 %v14, %v14
    %v97 = vmul.f32 %v15, %v15
    %v98 = vmul.f32 %v16, %v16
    %vm99 = vcmask 80896
    %v100 = vsel %vm99, %v95, 0.0
    %v101 = vsel %vm99, %v96, 0.0
    %v102 = vadd.f32 %v100, %v101
    %v103 = vsel %vm99, %v97, 0.0
    %v104 = vadd.f32 %v102, %v103
    %v105 = vsel %vm99, %v98, 0.0
    %v106 = vadd.f32 %v104, %v105
    %v107 = vrot.slane %v106, 4
    %v108 = vadd.f32 %v106, %v107
    %v109 = vrot.slane %v108, 2
    %v110 = vadd.f32 %v108, %v109
    %v111 = vrot.slane %v110, 1
    %v112 = vadd.f32 %v110, %v111
    %v113 = vadd.f32 %v94, %v112
    %v114 = vmul.f32 %v88, 2.0
    %v115 = vsub.f32 %v113, %v114
    %v116 = vmax.f32 %v115, 0.0
    %v117 = vadd.f32 %v116, 1.0
    %v118 = vrcp.pop %v117
    %v119 = vmul.f32 1.0, %v118
    %v120 = vsel %vm99, %v119, 0.0
    %121 = vadd.xlane.f32.xlu0 %v120
    %v122 = vpop.xlane.xlu0 %121
    %v123 = vrcp.pop %v122
    %v124 = vmul.f32 %v119, %v123
    %125 = vst.msk [vmem:[#allocation2] sm:$0xff] %vm99, %v124
    // Predicated region
    $region10: #{clustering_forward.1} parent=1 // pred_check
      _
    $region11: #{clustering_forward.1} parent=1 // pred_check_branch
      %127 = sbr.rel (0) target = $region13
    $region12: #{clustering_forward.1} parent=1 // pred_region
      %s129 = ssub.s32 128, 128
      %130 = vsyncadd [#allocation3], %s129
      %s132 = sshll.u32 [#allocation2], 4
      %s133 = int_to_ptr.vmem [resolvable:$true] %s132
      %135 = dma.vmem_to_hbm [thread:$0]  %s133, 128, %s2, [#allocation3]
    $region13: #{clustering_forward.1} parent=1 // pred_fallthru
      _
    // Predicated region
    $region14: #{clustering_forward.1} parent=1 // pred_check
      _
    $region15: #{clustering_forward.1} parent=1 // pred_check_branch
      %137 = sbr.rel (0) target = $region17
    $region16: #{clustering_forward.1} parent=1 // pred_region
      %138 = dma.done [#allocation3], 128
    $region17: #{clustering_forward.1} parent=1 // pred_fallthru
      _
    %139 = vsyncpa [#allocation3], 1

</llo_original>
